<compile_context>
chip_gen: v7x
topology: tpu7x:2x2x1
jax: 0.10.0
libtpu: 0.0.40
codegen_flags: <defaults>
</compile_context>

<pallas_src>
import functools

import jax
import jax.numpy as jnp
from jax.experimental import pallas as pl
from jax.experimental.pallas import tpu as pltpu


def _round_up(x, m):
    return (x + m - 1) // m * m


def _pick_tile(n_rows, target_rows, sub):
    """Rows-per-block (multiple of `sub`) and grid size.

    Aims for `target_rows` rows per block, near-equal blocks, and (best effort) an
    even block count so both v7x TensorCores get equal shares of the parallel axis.
    """
    target = max(sub, _round_up(target_rows, sub))
    if target >= n_rows:
        return _round_up(n_rows, sub), 1
    grid = pl.cdiv(n_rows, target)
    if grid > 1 and grid % 2 == 1:
        grid += 1                                   # best-effort even split (v7x megacore)
    tile = max(sub, _round_up(pl.cdiv(n_rows, grid), sub))
    return tile, pl.cdiv(n_rows, tile)


def _vmem_limit(block_bytes):
    # 2x double-buffered (input + output) blocks + params/seg-matrix + slack.
    need = 4 * block_bytes + (1 << 20)
    if need <= 12 * 1024 * 1024:                    # fits every generation's scoped default
        return None
    return min(need + (2 << 20), 56 * 1024 * 1024)  # stay under v7x's 64 MiB physical VMEM


def _ln_folded_kernel(z_ref, seg_ref, g_ref, b_ref, o_ref, *, eps, hdim):
    """Lane-dense path: each 128-lane row of z_ref holds 128//hdim independent LN rows."""
    z = z_ref[...].astype(jnp.float32)              # (R, 128)
    seg = seg_ref[...]                              # (128, 128) block-diagonal ones, f32
    # Per-H-lane-segment sum, broadcast back to every lane of its segment, via the MXU.
    mu = jnp.dot(z, seg, preferred_element_type=jnp.float32) * (1.0 / hdim)
    d = z - mu
    ssq = jnp.dot(d * d, seg, preferred_element_type=jnp.float32)
    # torch.std is unbiased -> divide by (H - 1); eps is added to sigma (not var).
    denom = jnp.sqrt(ssq * (1.0 / (hdim - 1))) + eps
    inv = pl.reciprocal(denom, approx=True)         # EUP
    inv = inv * (2.0 - denom * inv)                 # one Newton step -> ~f32 accuracy
    o_ref[...] = (d * inv * g_ref[...] + b_ref[...]).astype(o_ref.dtype)


def _ln_rowwise_kernel(z_ref, g_ref, b_ref, o_ref, *, eps, hdim):
    """Fallback path (H does not fold into 128 lanes): plain row-wise reduction."""
    z = z_ref[...].astype(jnp.float32)
    mu = jnp.mean(z, axis=-1, keepdims=True)
    d = z - mu
    var = jnp.sum(d * d, axis=-1, keepdims=True) * (1.0 / (hdim - 1))
    denom = jnp.sqrt(var) + eps
    inv = pl.reciprocal(denom, approx=True)
    inv = inv * (2.0 - denom * inv)
    o_ref[...] = (d * inv * g_ref[...] + b_ref[...]).astype(o_ref.dtype)


def layer_normalization(z, gamma, beta, *, eps=1e-3, row_tile=16384):
    """z: [B, S, H]; gamma/beta ('a2'/'b2'): [H].  Returns [B, S, H]."""
    B, S, H = z.shape
    if S == 1:                                      # module: `if z.size(1) == 1: return z`
        return z
    if H < 2:
        raise ValueError("unbiased std needs d_hid >= 2 (H-1 would be 0)")

    n_rows = B * S
    itemsize = jnp.dtype(z.dtype).itemsize
    sub = max(8, 32 // itemsize)                    # sublane multiple: 8 f32, 16 bf16, 32 i8/fp8
    fold = (128 // H) if (H <= 128 and 128 % H == 0) else 1

    if fold > 1:
        # ---- lane-dense folded path -------------------------------------------------
        lanes = fold * H                            # == 128
        pad = (-n_rows) % fold
        z2d = z.reshape(n_rows, H)
        if pad:
            z2d = jnp.pad(z2d, ((0, pad), (0, 0)))  # pad to a multiple of `fold`, slice after
        n_pad_rows = n_rows + pad
        n_fold = n_pad_rows // fold
        zf = z2d.reshape(n_fold, lanes)             # free contiguous reshape

        g = jnp.tile(gamma.astype(jnp.float32), fold).reshape(1, lanes)
        b = jnp.tile(beta.astype(jnp.float32), fold).reshape(1, lanes)
        lane = jnp.arange(lanes)
        seg = (lane[:, None] // H == lane[None, :] // H).astype(jnp.float32)  # block-diag ones

        tile_f, grid = _pick_tile(n_fold, max(1, row_tile // fold), sub)
        limit = _vmem_limit(tile_f * lanes * itemsize)
        kernel = functools.partial(_ln_folded_kernel, eps=eps, hdim=H)

        out = pl.pallas_call(
            kernel,
            out_shape=jax.ShapeDtypeStruct((n_fold, lanes), z.dtype),
            grid_spec=pltpu.PrefetchScalarGridSpec(
                num_scalar_prefetch=0,
                grid=(grid,),
                in_specs=[
                    pl.BlockSpec((tile_f, lanes), lambda i: (i, 0)),   # folded z rows
                    pl.BlockSpec((lanes, lanes), lambda i: (0, 0)),    # segment-sum matrix (resident)
                    pl.BlockSpec((1, lanes), lambda i: (0, 0)),        # gamma (a2), tiled lane-dense
                    pl.BlockSpec((1, lanes), lambda i: (0, 0)),        # beta  (b2), tiled lane-dense
                ],
                out_specs=pl.BlockSpec((tile_f, lanes), lambda i: (i, 0)),
            ),
            compiler_params=pltpu.CompilerParams(
                dimension_semantics=("parallel",),
                vmem_limit_bytes=limit),
        )(zf, seg, g, b)

        out = out.reshape(n_pad_rows, H)
        if pad:
            out = out[:n_rows]
        return out.reshape(B, S, H)

    # ---- fallback path (H doesn't divide 128, or H >= 128 already lane dense) -------
    zf = z.reshape(n_rows, H)
    g = gamma.astype(jnp.float32).reshape(1, H)
    b = beta.astype(jnp.float32).reshape(1, H)

    tile, grid = _pick_tile(n_rows, row_tile, sub)
    limit = _vmem_limit(tile * H * itemsize)
    kernel = functools.partial(_ln_rowwise_kernel, eps=eps, hdim=H)

    out = pl.pallas_call(
        kernel,
        out_shape=jax.ShapeDtypeStruct((n_rows, H), z.dtype),
        grid_spec=pltpu.PrefetchScalarGridSpec(
            num_scalar_prefetch=0,
            grid=(grid,),
            in_specs=[
                pl.BlockSpec((tile, H), lambda i: (i, 0)),
                pl.BlockSpec((1, H), lambda i: (0, 0)),
                pl.BlockSpec((1, H), lambda i: (0, 0)),
            ],
            out_specs=pl.BlockSpec((tile, H), lambda i: (i, 0)),
        ),
        compiler_params=pltpu.CompilerParams(
            dimension_semantics=("parallel",),
            vmem_limit_bytes=limit),
    )(zf, g, b)

    return out.reshape(B, S, H)


def _reference(z, gamma, beta, eps=1e-3):
    if z.shape[1] == 1:
        return z
    mu = jnp.mean(z, axis=-1, keepdims=True)
    sigma = jnp.sqrt(jnp.sum((z - mu) ** 2, axis=-1, keepdims=True)
                     / (z.shape[-1] - 1))
    return (z - mu) / (sigma + eps) * gamma + beta


if __name__ == "__main__":
    key = jax.random.PRNGKey(0)
    B, S, H = 2, 8, 32

    k_z, k_g, k_b, k_z2, k_z3, k_z4, k_g2, k_b2 = jax.random.split(key, 8)
    z = jax.random.normal(k_z, (B, S, H), dtype=jnp.float32)
    gamma = 1.0 + 0.1 * jax.random.normal(k_g, (H,), dtype=jnp.float32)   # a2
    beta = 0.1 * jax.random.normal(k_b, (H,), dtype=jnp.float32)          # b2

    # Folded lane-dense path (H=32 -> 4 LN rows per 128-lane vreg row).
    out = jax.block_until_ready(layer_normalization(z, gamma, beta))
    ref = _reference(z, gamma, beta)
    assert out.shape == (B, S, H)
    assert jnp.allclose(out, ref, atol=1e-4, rtol=1e-4), "mismatch vs reference"

    # Ragged row count (B*S not a multiple of the fold factor) -> pad-and-slice path.
    z_ragged = jax.random.normal(k_z2, (3, 5, H), dtype=jnp.float32)
    out_r = jax.block_until_ready(layer_normalization(z_ragged, gamma, beta))
    ref_r = _reference(z_ragged, gamma, beta)
    assert jnp.allclose(out_r, ref_r, atol=1e-4, rtol=1e-4), "ragged mismatch"

    # Multi-block grid path (small row_tile forces grid > 1, exercises block balancing).
    z_big = jax.random.normal(k_z3, (4, 64, H), dtype=jnp.float32)
    out_g = jax.block_until_ready(layer_normalization(z_big, gamma, beta, row_tile=32))
    ref_g = _reference(z_big, gamma, beta)
    assert jnp.allclose(out_g, ref_g, atol=1e-4, rtol=1e-4), "multi-block mismatch"

    # Fallback row-wise path (H does not divide 128).
    H2 = 48
    z48 = jax.random.normal(k_z4, (2, 8, H2), dtype=jnp.float32)
    gamma48 = 1.0 + 0.1 * jax.random.normal(k_g2, (H2,), dtype=jnp.float32)
    beta48 = 0.1 * jax.random.normal(k_b2, (H2,), dtype=jnp.float32)
    out48 = jax.block_until_ready(layer_normalization(z48, gamma48, beta48))
    ref48 = _reference(z48, gamma48, beta48)
    assert jnp.allclose(out48, ref48, atol=1e-4, rtol=1e-4), "fallback mismatch"

    # seq-len == 1 early-return path (module returns z unchanged).
    z1 = z[:, :1, :]
    assert jnp.array_equal(layer_normalization(z1, gamma, beta), z1)

    print("KERNEL_OK")
</pallas_src>

<mosaic_0001>
module attributes {stable_mosaic.version = 11 : i64} {
  func.func @_ln_folded_kernel(%arg0: i32, %arg1: memref<8x128xf32, #tpu.memory_space<vmem>>, %arg2: memref<128x128xf32, #tpu.memory_space<vmem>>, %arg3: memref<1x128xf32, #tpu.memory_space<vmem>>, %arg4: memref<1x128xf32, #tpu.memory_space<vmem>>, %arg5: memref<8x128xf32, #tpu.memory_space<vmem>>) attributes {dimension_semantics = [#tpu.dimension_semantics<parallel>], iteration_bounds = array<i64: 1>, scalar_prefetch = 0 : i64, scratch_operands = 0 : i64, tpu.core_type = #tpu.core_type<tc>, window_params = [{transform_indices = @transform_0, window_bounds = array<i64: 8, 128>}, {pipeline_mode = #tpu.pipeline_mode<synchronous>, transform_indices = @transform_1, window_bounds = array<i64: 128, 128>}, {pipeline_mode = #tpu.pipeline_mode<synchronous>, transform_indices = @transform_2, window_bounds = array<i64: 1, 128>}, {pipeline_mode = #tpu.pipeline_mode<synchronous>, transform_indices = @transform_3, window_bounds = array<i64: 1, 128>}, {transform_indices = @transform_4, window_bounds = array<i64: 8, 128>}]} {
    %c0 = arith.constant 0 : index
    %c0_0 = arith.constant 0 : index
    %0 = vector.load %arg1[%c0, %c0_0] : memref<8x128xf32, #tpu.memory_space<vmem>>, vector<8x128xf32>
    %c0_1 = arith.constant 0 : index
    %c0_2 = arith.constant 0 : index
    %1 = vector.load %arg2[%c0_1, %c0_2] : memref<128x128xf32, #tpu.memory_space<vmem>>, vector<128x128xf32>
    %cst = arith.constant dense<0.000000e+00> : vector<8x128xf32>
    %2 = tpu.matmul %0, %1, %cst {dimension_numbers = #tpu.dot_dimension_numbers<[1], [0], [0], [1], [0, 0, 1, 1], [], []>} : vector<8x128xf32>, vector<128x128xf32>, vector<8x128xf32> -> vector<8x128xf32>
    %cst_3 = arith.constant 3.125000e-02 : f32
    %3 = vector.broadcast %cst_3 : f32 to vector<8x128xf32>
    %4 = arith.mulf %2, %3 : vector<8x128xf32>
    %5 = arith.subf %0, %4 : vector<8x128xf32>
    %6 = arith.mulf %5, %5 : vector<8x128xf32>
    %cst_4 = arith.constant dense<0.000000e+00> : vector<8x128xf32>
    %7 = tpu.matmul %6, %1, %cst_4 {dimension_numbers = #tpu.dot_dimension_numbers<[1], [0], [0], [1], [0, 0, 1, 1], [], []>} : vector<8x128xf32>, vector<128x128xf32>, vector<8x128xf32> -> vector<8x128xf32>
    %cst_5 = arith.constant 0.0322580636 : f32
    %8 = vector.broadcast %cst_5 : f32 to vector<8x128xf32>
    %9 = arith.mulf %7, %8 : vector<8x128xf32>
    %10 = math.sqrt %9 : vector<8x128xf32>
    %cst_6 = arith.constant 1.000000e-03 : f32
    %11 = vector.broadcast %cst_6 : f32 to vector<8x128xf32>
    %12 = arith.addf %10, %11 : vector<8x128xf32>
    %13 = tpu.reciprocal %12 {approx = true} : vector<8x128xf32> -> vector<8x128xf32>
    %14 = arith.mulf %12, %13 : vector<8x128xf32>
    %cst_7 = arith.constant 2.000000e+00 : f32
    %15 = vector.broadcast %cst_7 : f32 to vector<8x128xf32>
    %16 = arith.subf %15, %14 : vector<8x128xf32>
    %17 = arith.mulf %13, %16 : vector<8x128xf32>
    %18 = arith.mulf %5, %17 : vector<8x128xf32>
    %c0_8 = arith.constant 0 : index
    %c0_9 = arith.constant 0 : index
    %19 = vector.load %arg3[%c0_8, %c0_9] : memref<1x128xf32, #tpu.memory_space<vmem>>, vector<1x128xf32>
    %20 = vector.broadcast %19 : vector<1x128xf32> to vector<8x128xf32>
    %21 = arith.mulf %18, %20 : vector<8x128xf32>
    %c0_10 = arith.constant 0 : index
    %c0_11 = arith.constant 0 : index
    %22 = vector.load %arg4[%c0_10, %c0_11] : memref<1x128xf32, #tpu.memory_space<vmem>>, vector<1x128xf32>
    %23 = vector.broadcast %22 : vector<1x128xf32> to vector<8x128xf32>
    %24 = arith.addf %21, %23 : vector<8x128xf32>
    %c0_12 = arith.constant 0 : index
    %c0_13 = arith.constant 0 : index
    %25 = vector.load %arg5[%c0_12, %c0_13] : memref<8x128xf32, #tpu.memory_space<vmem>>, vector<8x128xf32>
    tpu.vector_store %arg5[%c0_12, %c0_13], %24 {strides = array<i32>} : memref<8x128xf32, #tpu.memory_space<vmem>>, vector<8x128xf32>,
    return
  }
  func.func @transform_0(%arg0: i32) -> (i32, i32) {
    %c0_i32 = arith.constant 0 : i32
    %c0_i32_0 = arith.constant 0 : i32
    return %arg0, %c0_i32 : i32, i32
  }
  func.func @transform_1(%arg0: i32) -> (i32, i32) {
    %c0_i32 = arith.constant 0 : i32
    %c0_i32_0 = arith.constant 0 : i32
    %c0_i32_1 = arith.constant 0 : i32
    return %c0_i32, %c0_i32_0 : i32, i32
  }
  func.func @transform_2(%arg0: i32) -> (i32, i32) {
    %c0_i32 = arith.constant 0 : i32
    %c0_i32_0 = arith.constant 0 : i32
    %c0_i32_1 = arith.constant 0 : i32
    return %c0_i32, %c0_i32_0 : i32, i32
  }
  func.func @transform_3(%arg0: i32) -> (i32, i32) {
    %c0_i32 = arith.constant 0 : i32
    %c0_i32_0 = arith.constant 0 : i32
    %c0_i32_1 = arith.constant 0 : i32
    return %c0_i32, %c0_i32_0 : i32, i32
  }
  func.func @transform_4(%arg0: i32) -> (i32, i32) {
    %c0_i32 = arith.constant 0 : i32
    %c0_i32_0 = arith.constant 0 : i32
    return %arg0, %c0_i32 : i32, i32
  }
}

</mosaic_0001>

<llo_original>
// kernel: tpu_custom_call.1
$region0: #{tpu_custom_call.1}
  #allocation0 [shape = 'u32[]', space=smem, size = 0x4, offset = 0x4, fixed_abs, tag = 'smem constant byte address 0x4 - core index']
  #allocation1 [shape = 'u32[144,128]{1,0:T(1,128)}', space=vmem, size = 0x12000, scoped, tag = 'internal scratch']
  %s0 = inlined_call_operand.hbm [shape: f32[4,128], index: 0, kind: input, shape index: {}]
  %s1 = inlined_call_operand.hbm [shape: f32[128,128], index: 1, kind: input, shape index: {}]
  %s2 = inlined_call_operand.vmem [shape: f32[1,128], index: 2, kind: input, shape index: {}]
  %s3 = inlined_call_operand.vmem [shape: f32[1,128], index: 3, kind: input, shape index: {}]
  %s4 = inlined_call_operand.hbm [shape: f32[4,128], index: 4, kind: output, shape index: {}]
  %s5 = sld [smem:[#allocation0]]
  $region34: #{tpu_custom_call.1} parent=0
    _
  %s7 = ssub.s32 1, %s5
  %s8 = scalar_select 0, %s7, %s5
  $region1: #{tpu_custom_call.1} parent=0
    #allocation2 [shape = 'u8[4096]{0}', space=vmem, size = 0x1000, scoped, tag = 'input window, operand 0, single buffered']
    #allocation3 [shape = 's32[1]{0}', space=sflag, size = 0x4, scoped, tag = 'scoped memory for tpu_custom_call.1']
    #allocation4 [shape = 's32[1]{0}', space=sflag, size = 0x4, scoped, tag = 'scoped memory for tpu_custom_call.1']
    #allocation5 [shape = 'u8[65536]{0}', space=vmem, size = 0x10000, scoped, tag = 'input window, operand 1, single buffered']
    #allocation6 [shape = 's32[1]{0}', space=sflag, size = 0x4, scoped, tag = 'scoped memory for tpu_custom_call.1']
    #allocation7 [shape = 'u8[4096]{0}', space=vmem, size = 0x1000, scoped, tag = 'output window, operand 0, single buffered']
    %9 = vsyncpa [#allocation3], 0
    %10 = vsyncpa [#allocation6], 0
    %11 = vsyncpa [#allocation4], 0
    // Predicated region
    $region2: #{tpu_custom_call.1} parent=1 // pred_check
      _
    $region3: #{tpu_custom_call.1} parent=1 // pred_check_branch
      %13 = sbr.rel (0) target = $region5
    $region4: #{tpu_custom_call.1} parent=1 // pred_region
      %s15 = ssub.s32 128, 64
      %16 = vsyncadd [#allocation3], %s15
      %s17 = sshll.u32 [#allocation2], 4
      %s18 = int_to_ptr.vmem [resolvable:$true] %s17
      %23 = dma.hbm_to_vmem [thread:$0]  %s0, 64, %s18, [#allocation3], 64, 64, 4
    $region5: #{tpu_custom_call.1} parent=1 // pred_fallthru
      _
    // Predicated region
    $region6: #{tpu_custom_call.1} parent=1 // pred_check
      _
    $region7: #{tpu_custom_call.1} parent=1 // pred_check_branch
      %25 = sbr.rel (0) target = $region9
    $region8: #{tpu_custom_call.1} parent=1 // pred_region
      %s27 = ssub.s32 2048, 2048
      %28 = vsyncadd [#allocation6], %s27
      %s29 = sshll.u32 [#allocation5], 4
      %s30 = int_to_ptr.vmem [resolvable:$true] %s29
      %35 = dma.hbm_to_vmem [thread:$0]  %s1, 2048, %s30, [#allocation6], 128, 128, 8
    $region9: #{tpu_custom_call.1} parent=1 // pred_fallthru
      _
    // Predicated region
    $region10: #{tpu_custom_call.1} parent=1 // pred_check
      _
    $region11: #{tpu_custom_call.1} parent=1 // pred_check_branch
      %37 = sbr.rel (0) target = $region13
    $region12: #{tpu_custom_call.1} parent=1 // pred_region
      _
    $region13: #{tpu_custom_call.1} parent=1 // pred_fallthru
      _
    // Predicated region
    $region14: #{tpu_custom_call.1} parent=1 // pred_check
      _
    $region15: #{tpu_custom_call.1} parent=1 // pred_check_branch
      %39 = sbr.rel (0) target = $region17
    $region16: #{tpu_custom_call.1} parent=1 // pred_region
      _
    $region17: #{tpu_custom_call.1} parent=1 // pred_fallthru
      _
    // Predicated region
    $region18: #{tpu_custom_call.1} parent=1 // pred_check
      _
    $region19: #{tpu_custom_call.1} parent=1 // pred_check_branch
      %41 = sbr.rel (0) target = $region21
    $region20: #{tpu_custom_call.1} parent=1 // pred_region
      %42 = dma.done [#allocation3], 128
    $region21: #{tpu_custom_call.1} parent=1 // pred_fallthru
      _
    // Predicated region
    $region22: #{tpu_custom_call.1} parent=1 // pred_check
      _
    $region23: #{tpu_custom_call.1} parent=1 // pred_check_branch
      %44 = sbr.rel (0) target = $region25
    $region24: #{tpu_custom_call.1} parent=1 // pred_region
      %45 = dma.done [#allocation6], 2048
    $region25: #{tpu_custom_call.1} parent=1 // pred_fallthru
      _
    %v46 = vld [vmem:[#allocation2] sm:$0xff]
    %v47 = vld [vmem:[#allocation5] sm:$0xff]
    %v48 = vld [vmem:[#allocation5 + $0x8] sm:$0xff]
    %v49 = vld [vmem:[#allocation5 + $0x10] sm:$0xff]
    %v50 = vld [vmem:[#allocation5 + $0x18] sm:$0xff]
    %v51 = vld [vmem:[#allocation5 + $0x20] sm:$0xff]
    %v52 = vld [vmem:[#allocation5 + $0x28] sm:$0xff]
    %v53 = vld [vmem:[#allocation5 + $0x30] sm:$0xff]
    %v54 = vld [vmem:[#allocation5 + $0x38] sm:$0xff]
    %v55 = vld [vmem:[#allocation5 + $0x40] sm:$0xff]
    %v56 = vld [vmem:[#allocation5 + $0x48] sm:$0xff]
    %v57 = vld [vmem:[#allocation5 + $0x50] sm:$0xff]
    %v58 = vld [vmem:[#allocation5 + $0x58] sm:$0xff]
    %v59 = vld [vmem:[#allocation5 + $0x60] sm:$0xff]
    %v60 = vld [vmem:[#allocation5 + $0x68] sm:$0xff]
    %v61 = vld [vmem:[#allocation5 + $0x70] sm:$0xff]
    %v62 = vld [vmem:[#allocation5 + $0x78] sm:$0xff]
    %63 = vmatprep.subr.mxu0 0.0
    %64 = vmatpush1.msra.mxu0 %v47
    %65 = vmatprep.subr.mxu0 0.0
    %66 = vmatpush1.msra.mxu0 %v48
    %67 = vmatprep.subr.mxu0 0.0
    %68 = vmatpush1.msra.mxu0 %v49
    %69 = vmatprep.subr.mxu0 0.0
    %70 = vmatpush1.msra.mxu0 %v50
    %71 = vmatprep.subr.mxu0 0.0
    %72 = vmatpush1.msra.mxu0 %v51
    %73 = vmatprep.subr.mxu0 0.0
    %74 = vmatpush1.msra.mxu0 %v52
    %75 = vmatprep.subr.mxu0 0.0
    %76 = vmatpush1.msra.mxu0 %v53
    %77 = vmatprep.subr.mxu0 0.0
    %78 = vmatpush1.msra.mxu0 %v54
    %79 = vmatprep.subr.mxu0 0.0
    %80 = vmatpush1.msra.mxu0 %v55
    %81 = vmatprep.subr.mxu0 0.0
    %82 = vmatpush1.msra.mxu0 %v56
    %83 = vmatprep.subr.mxu0 0.0
    %84 = vmatpush1.msra.mxu0 %v57
    %85 = vmatprep.subr.mxu0 0.0
    %86 = vmatpush1.msra.mxu0 %v58
    %87 = vmatprep.subr.mxu0 0.0
    %88 = vmatpush1.msra.mxu0 %v59
    %89 = vmatprep.subr.mxu0 0.0
    %90 = vmatpush1.msra.mxu0 %v60
    %91 = vmatprep.subr.mxu0 0.0
    %92 = vmatpush1.msra.mxu0 %v61
    %93 = vmatprep.subr.mxu0 0.0
    %94 = vmatpush1.msra.mxu0 %v62
    %95 = vmatprep.subr.mxu0 0.0
    %96 = vmatpush1.msra.mxu0 0.0
    %97 = vmatprep.subr.mxu0 0.0
    %98 = vmatpush1.msra.mxu0 0.0
    %99 = vmatprep.subr.mxu0 0.0
    %100 = vmatpush1.msra.mxu0 0.0
    %101 = vmatprep.subr.mxu0 0.0
    %102 = vmatpush1.msra.mxu0 0.0
    %103 = vmatprep.subr.mxu0 0.0
    %104 = vmatpush1.msra.mxu0 0.0
    %105 = vmatprep.subr.mxu0 0.0
    %106 = vmatpush1.msra.mxu0 0.0
    %107 = vmatprep.subr.mxu0 0.0
    %108 = vmatpush1.msra.mxu0 0.0
    %109 = vmatprep.subr.mxu0 0.0
    %110 = vmatpush1.msra.mxu0 0.0
    %111 = vmatprep.subr.mxu0 0.0
    %112 = vmatpush1.msra.mxu0 0.0
    %113 = vmatprep.subr.mxu0 0.0
    %114 = vmatpush1.msra.mxu0 0.0
    %115 = vmatprep.subr.mxu0 0.0
    %116 = vmatpush1.msra.mxu0 0.0
    %117 = vmatprep.subr.mxu0 0.0
    %118 = vmatpush1.msra.mxu0 0.0
    %119 = vmatprep.subr.mxu0 0.0
    %120 = vmatpush1.msra.mxu0 0.0
    %121 = vmatprep.subr.mxu0 0.0
    %122 = vmatpush1.msra.mxu0 0.0
    %123 = vmatprep.subr.mxu0 0.0
    %124 = vmatpush1.msra.mxu0 0.0
    %125 = vmatprep.subr.mxu0 0.0
    %126 = vmatpush1.msra.mxu0 0.0
    %127 = vmatprep.mubr.f32.mxu0 0.0
    %128 = vmatmul.mubr.f32.gmra.mrb[0].mxu0 %v46
    %v129 = vpop.f32.mrb[0].mxu0
    %v130 = vadd.f32 0.0, %v129
    %v131 = vpop.f32.mrb[0].mxu0
    %132 = vdwg.mxu0
    %v133 = vmul.f32 %v130, 0.03125
    %v134 = vsub.f32 %v46, %v133
    %v135 = vmul.f32 %v134, %v134
    %136 = vmatprep.subr.mxu0 0.0
    %137 = vmatpush1.msra.mxu0 %v47
    %138 = vmatprep.subr.mxu0 0.0
    %139 = vmatpush1.msra.mxu0 %v48
    %140 = vmatprep.subr.mxu0 0.0
    %141 = vmatpush1.msra.mxu0 %v49
    %142 = vmatprep.subr.mxu0 0.0
    %143 = vmatpush1.msra.mxu0 %v50
    %144 = vmatprep.subr.mxu0 0.0
    %145 = vmatpush1.msra.mxu0 %v51
    %146 = vmatprep.subr.mxu0 0.0
    %147 = vmatpush1.msra.mxu0 %v52
    %148 = vmatprep.subr.mxu0 0.0
    %149 = vmatpush1.msra.mxu0 %v53
    %150 = vmatprep.subr.mxu0 0.0
    %151 = vmatpush1.msra.mxu0 %v54
    %152 = vmatprep.subr.mxu0 0.0
    %153 = vmatpush1.msra.mxu0 %v55
    %154 = vmatprep.subr.mxu0 0.0
    %155 = vmatpush1.msra.mxu0 %v56
    %156 = vmatprep.subr.mxu0 0.0
    %157 = vmatpush1.msra.mxu0 %v57
    %158 = vmatprep.subr.mxu0 0.0
    %159 = vmatpush1.msra.mxu0 %v58
    %160 = vmatprep.subr.mxu0 0.0
    %161 = vmatpush1.msra.mxu0 %v59
    %162 = vmatprep.subr.mxu0 0.0
    %163 = vmatpush1.msra.mxu0 %v60
    %164 = vmatprep.subr.mxu0 0.0
    %165 = vmatpush1.msra.mxu0 %v61
    %166 = vmatprep.subr.mxu0 0.0
    %167 = vmatpush1.msra.mxu0 %v62
    %168 = vmatprep.subr.mxu0 0.0
    %169 = vmatpush1.msra.mxu0 0.0
    %170 = vmatprep.subr.mxu0 0.0
    %171 = vmatpush1.msra.mxu0 0.0
    %172 = vmatprep.subr.mxu0 0.0
    %173 = vmatpush1.msra.mxu0 0.0
    %174 = vmatprep.subr.mxu0 0.0
    %175 = vmatpush1.msra.mxu0 0.0
    %176 = vmatprep.subr.mxu0 0.0
    %177 = vmatpush1.msra.mxu0 0.0
    %178 = vmatprep.subr.mxu0 0.0
    %179 = vmatpush1.msra.mxu0 0.0
    %180 = vmatprep.subr.mxu0 0.0
    %181 = vmatpush1.msra.mxu0 0.0
    %182 = vmatprep.subr.mxu0 0.0
    %183 = vmatpush1.msra.mxu0 0.0
    %184 = vmatprep.subr.mxu0 0.0
    %185 = vmatpush1.msra.mxu0 0.0
    %186 = vmatprep.subr.mxu0 0.0
    %187 = vmatpush1.msra.mxu0 0.0
    %188 = vmatprep.subr.mxu0 0.0
    %189 = vmatpush1.msra.mxu0 0.0
    %190 = vmatprep.subr.mxu0 0.0
    %191 = vmatpush1.msra.mxu0 0.0
    %192 = vmatprep.subr.mxu0 0.0
    %193 = vmatpush1.msra.mxu0 0.0
    %194 = vmatprep.subr.mxu0 0.0
    %195 = vmatpush1.msra.mxu0 0.0
    %196 = vmatprep.subr.mxu0 0.0
    %197 = vmatpush1.msra.mxu0 0.0
    %198 = vmatprep.subr.mxu0 0.0
    %199 = vmatpush1.msra.mxu0 0.0
    %200 = vmatprep.mubr.f32.mxu0 0.0
    %201 = vmatmul.mubr.f32.gmra.mrb[0].mxu0 %v135
    %v202 = vpop.f32.mrb[0].mxu0
    %v203 = vadd.f32 0.0, %v202
    %v204 = vpop.f32.mrb[0].mxu0
    %205 = vdwg.mxu0
    %v206 = vmul.f32 %v203, 0.032258064
    %v207 = vrsqrt.pop %v206
    %v208 = vmul.f32 %v206, %v207
    %vm209 = vcmp.eq.f32.partialorder %v206, inf
    %v210 = vsel %vm209, %v206, %v208
    %vm211 = vcmp.eq.f32.partialorder %v206, 0.0
    %v212 = vand.u32 %v206, 2147483648
    %v213 = vsel %vm211, %v212, %v210
    %v214 = vadd.f32 %v213, 0.001
    %v215 = vrcp.pop %v214
    %v216 = vmul.f32 %v214, %v215
    %v217 = vsub.f32 2.0, %v216
    %v218 = vmul.f32 %v215, %v217
    %v219 = vmul.f32 %v134, %v218
    %v220 = vld [vmem:[%s2] sm:$0x1]
    %v222 = vlaneseq
    %v223 = vshrl.u32 %v222, 7
    %v224 = vsub.s32 0, %v223
    %v225 = vrot.slane %v220, %v224
    %v227 = vmul.f32 %v219, %v225
    %v228 = vld [vmem:[%s3] sm:$0x1]
    %v230 = vlaneseq
    %v231 = vshrl.u32 %v230, 7
    %v232 = vsub.s32 0, %v231
    %v233 = vrot.slane %v228, %v232
    %v235 = vadd.f32 %v227, %v233
    %236 = vst [vmem:[#allocation7] sm:$0xff] %v235
    // Predicated region
    $region26: #{tpu_custom_call.1} parent=1 // pred_check
      _
    $region27: #{tpu_custom_call.1} parent=1 // pred_check_branch
      %238 = sbr.rel (0) target = $region29
    $region28: #{tpu_custom_call.1} parent=1 // pred_region
      %s240 = ssub.s32 128, 64
      %241 = vsyncadd [#allocation4], %s240
      %s242 = sshll.u32 [#allocation7], 4
      %s243 = int_to_ptr.vmem [resolvable:$true] %s242
      %248 = dma.vmem_to_hbm [thread:$0]  %s243, 64, %s4, [#allocation4], 64, 64, 4
    $region29: #{tpu_custom_call.1} parent=1 // pred_fallthru
      _
    // Predicated region
    $region30: #{tpu_custom_call.1} parent=1 // pred_check
      _
    $region31: #{tpu_custom_call.1} parent=1 // pred_check_branch
      %250 = sbr.rel (0) target = $region33
    $region32: #{tpu_custom_call.1} parent=1 // pred_region
      %251 = dma.done [#allocation4], 128
    $region33: #{tpu_custom_call.1} parent=1 // pred_fallthru
      _
    %252 = vsyncpa [#allocation3], 1
    %253 = vsyncpa [#allocation6], 1
    %254 = vsyncpa [#allocation4], 1

</llo_original>
